<compile_context>
chip_gen: v6e
topology: v6e:2x2x1
jax: 0.10.0
libtpu: 0.0.40
codegen_flags: <defaults>
</compile_context>

<pallas_src>
import math
import functools

import numpy as np
import jax
import jax.numpy as jnp
from jax.experimental import pallas as pl
from jax.experimental.pallas import tpu as pltpu


TARGET_TILE_BYTES = 2 << 20   # ~2 MiB per output block (~4 MiB double-buffered)


def _round_up(x, m):
    return ((x + m - 1) // m) * m


def _sinusoidal_kernel(t_ref, fmask_ref, phase_ref, out_ref, *, pack):
    """(rb, pack) timesteps -> (rb, pack * out_dim) packed [sin | cos] embeddings.

    fmask_ref : (pack, W) block-diagonal masked frequencies; slot p's columns hold
                [f_0..f_{h-1}, f_0..f_{h-1}], all other columns are zero.
    phase_ref : (1, W) per-lane phase, 0 on sin lanes and pi/2 on cos lanes, so a
                single jnp.sin pass yields both halves (cos x == sin(x + pi/2)).
    """
    angles = phase_ref[...] + t_ref[:, 0:1] * fmask_ref[0:1, :]
    for p in range(1, pack):              # pack is tiny & static (<= 8)
        angles = angles + t_ref[:, p:p + 1] * fmask_ref[p:p + 1, :]
    # Single lane-dense (W % 128 == 0, or W == full dim) full-tile store.
    out_ref[...] = jnp.sin(angles).astype(out_ref.dtype)


@functools.lru_cache(maxsize=None)
def _embedding_constants(embed_dim):
    """Per-embed_dim constants, built once on device and cached across calls."""
    half_dim = embed_dim // 2
    assert half_dim >= 1, "embed_dim must be >= 2"
    out_dim = 2 * half_dim

    # Lane-dense packing factor so the kernel's last dim is a multiple of 128.
    pack = 128 // math.gcd(out_dim, 128)
    if pack > 8:          # awkward widths: skip packing (last dim == full dim is legal)
        pack = 1
    w = pack * out_dim

    # Same expression (and device evaluation) as the reference -> sin-lane angles
    # are bitwise identical.
    freqs = jnp.exp(-math.log(10000.0)
                    * jnp.arange(half_dim, dtype=jnp.float32) / half_dim)      # (half,)
    row = jnp.concatenate([freqs, freqs])                                       # (out_dim,)
    eye = jnp.asarray(np.eye(pack, dtype=np.float32))                           # (pack, pack)
    fmask = (eye[:, :, None] * row[None, None, :]).reshape(pack, w)             # (pack, W)

    cols = np.arange(w)
    phase = np.where((cols % out_dim) < half_dim,
                     np.float32(0.0), np.float32(np.pi / 2)).astype(np.float32)
    phase = jnp.asarray(phase[None, :])                                         # (1, W)
    return pack, out_dim, fmask, phase


@functools.partial(jax.jit, static_argnums=(3, 4, 5, 6))
def _sinusoidal_impl(t, fmask, phase, pack, out_dim, target_tile_bytes, out_dtype):
    b = t.shape[0]
    w = pack * out_dim
    bp = pl.cdiv(b, pack)            # packed kernel rows
    b_pad = bp * pack                # <= b + pack - 1 (== b when b % pack == 0)

    t_f32 = t.astype(jnp.float32)
    if b_pad != b:
        t_f32 = jnp.pad(t_f32, (0, b_pad - b))
    t_packed = t_f32.reshape(bp, pack)

    # Rows per tile: byte-capped (VMEM-safe on all chips); split into >= 2 grid
    # steps when possible so the "parallel" axis can shard across v7x's two TCs.
    if bp <= 8:
        rb = bp                                       # block dim == full dim is legal
    else:
        byte_cap = max(8, (target_tile_bytes // (w * 4)) // 8 * 8)
        rb = max(8, min(byte_cap, _round_up(pl.cdiv(bp, 2), 8)))
    grid = pl.cdiv(bp, rb)                            # Pallas masks the ragged last tile

    out_packed = pl.pallas_call(
        functools.partial(_sinusoidal_kernel, pack=pack),
        out_shape=jax.ShapeDtypeStruct((bp, w), out_dtype),
        grid=(grid,),
        in_specs=[
            pl.BlockSpec((rb, pack), lambda i: (i, 0)),   # timesteps, tiled over batch
            pl.BlockSpec((pack, w), lambda i: (0, 0)),    # masked freqs (resident constant)
            pl.BlockSpec((1, w), lambda i: (0, 0)),       # sin/cos phase (resident constant)
        ],
        out_specs=pl.BlockSpec((rb, w), lambda i: (i, 0)),
        compiler_params=pltpu.CompilerParams(
            dimension_semantics=("parallel",)),
    )(t_packed, fmask, phase)

    # Row-major un-pack is a free view; the [:b] slice only materializes a copy
    # when b % pack != 0 (never when pack == 1).
    out = out_packed.reshape(b_pad, out_dim)
    if b_pad != b:
        out = out[:b]
    return out


def sinusoidal_positional_embedding(t, embed_dim, *, out_dtype=jnp.float32,
                                    target_tile_bytes=TARGET_TILE_BYTES):
    """
    t: (batch,) int or float time steps
    returns: (batch, 2 * (embed_dim // 2)) == (batch, embed_dim) for even embed_dim,
             laid out [sin(t * f) | cos(t * f)] per row (matches torch.cat([sin, cos], -1)).
    """
    pack, out_dim, fmask, phase = _embedding_constants(embed_dim)
    return _sinusoidal_impl(t, fmask, phase, pack, out_dim, target_tile_bytes, out_dtype)


def _reference(t, embed_dim):
    half_dim = embed_dim // 2
    freqs = jnp.exp(-math.log(10000.0)
                    * jnp.arange(half_dim, dtype=jnp.float32) / half_dim)
    angles = t.astype(jnp.float32)[:, None] * freqs[None, :]
    return jnp.concatenate([jnp.sin(angles), jnp.cos(angles)], axis=-1)


if __name__ == "__main__":
    key = jax.random.PRNGKey(0)
    k1, k2, k3 = jax.random.split(key, 3)

    def check(t, embed_dim, atol):
        emb = jax.block_until_ready(sinusoidal_positional_embedding(t, embed_dim))
        ref = _reference(t, embed_dim)
        assert emb.shape == ref.shape, (emb.shape, ref.shape)
        err = float(jnp.max(jnp.abs(emb - ref)))
        assert err <= atol, (embed_dim, tuple(t.shape), err)

    # Primary check (diffusion timesteps).  Cos lanes use sin(x + pi/2): the extra
    # angle rounding is <= 0.5 * ulp(~1e3) ~ 3e-5, so atol=2e-4 is a comfortable bound.
    t1 = jax.random.randint(k1, (8,), 0, 1000).astype(jnp.int32)
    check(t1, 64, 2e-4)

    # Odd batch + pack=4 path: exercises batch padding and the guarded epilogue slice.
    t2 = jax.random.randint(k2, (5,), 0, 1000).astype(jnp.int32)
    check(t2, 32, 2e-4)

    # pack=1 path: multi-step "parallel" grid with a ragged last tile, no epilogue copy.
    t3 = jax.random.randint(k3, (200,), 0, 1000).astype(jnp.int32)
    check(t3, 128, 2e-4)

    print("KERNEL_OK")
</pallas_src>

<mosaic_0001>
module attributes {stable_mosaic.version = 11 : i64} {
  func.func @_sinusoidal_kernel(%arg0: i32, %arg1: memref<4x2xf32, #tpu.memory_space<vmem>>, %arg2: memref<2x128xf32, #tpu.memory_space<vmem>>, %arg3: memref<1x128xf32, #tpu.memory_space<vmem>>, %arg4: memref<4x128xf32, #tpu.memory_space<vmem>>) attributes {dimension_semantics = [#tpu.dimension_semantics<parallel>], iteration_bounds = array<i64: 1>, scalar_prefetch = 0 : i64, scratch_operands = 0 : i64, tpu.core_type = #tpu.core_type<tc>, window_params = [{transform_indices = @transform_0, window_bounds = array<i64: 4, 2>}, {pipeline_mode = #tpu.pipeline_mode<synchronous>, transform_indices = @transform_1, window_bounds = array<i64: 2, 128>}, {pipeline_mode = #tpu.pipeline_mode<synchronous>, transform_indices = @transform_2, window_bounds = array<i64: 1, 128>}, {transform_indices = @transform_3, window_bounds = array<i64: 4, 128>}]} {
    %c0 = arith.constant 0 : index
    %c0_0 = arith.constant 0 : index
    %0 = vector.load %arg3[%c0, %c0_0] : memref<1x128xf32, #tpu.memory_space<vmem>>, vector<1x128xf32>
    %c0_1 = arith.constant 0 : index
    %c0_2 = arith.constant 0 : index
    %1 = vector.load %arg1[%c0_1, %c0_2] : memref<4x2xf32, #tpu.memory_space<vmem>>, vector<4x1xf32>
    %c0_3 = arith.constant 0 : index
    %c0_4 = arith.constant 0 : index
    %2 = vector.load %arg2[%c0_3, %c0_4] : memref<2x128xf32, #tpu.memory_space<vmem>>, vector<1x128xf32>
    %3 = vector.broadcast %1 : vector<4x1xf32> to vector<4x128xf32>
    %4 = vector.broadcast %2 : vector<1x128xf32> to vector<4x128xf32>
    %5 = arith.mulf %3, %4 : vector<4x128xf32>
    %6 = vector.broadcast %0 : vector<1x128xf32> to vector<4x128xf32>
    %7 = arith.addf %6, %5 : vector<4x128xf32>
    %c0_5 = arith.constant 0 : index
    %c1 = arith.constant 1 : index
    %8 = vector.load %arg1[%c0_5, %c1] : memref<4x2xf32, #tpu.memory_space<vmem>>, vector<4x1xf32>
    %c1_6 = arith.constant 1 : index
    %c0_7 = arith.constant 0 : index
    %9 = vector.load %arg2[%c1_6, %c0_7] : memref<2x128xf32, #tpu.memory_space<vmem>>, vector<1x128xf32>
    %10 = vector.broadcast %8 : vector<4x1xf32> to vector<4x128xf32>
    %11 = vector.broadcast %9 : vector<1x128xf32> to vector<4x128xf32>
    %12 = arith.mulf %10, %11 : vector<4x128xf32>
    %13 = arith.addf %7, %12 : vector<4x128xf32>
    %14 = math.sin %13 : vector<4x128xf32>
    %c0_8 = arith.constant 0 : index
    %c0_9 = arith.constant 0 : index
    %15 = vector.load %arg4[%c0_8, %c0_9] : memref<4x128xf32, #tpu.memory_space<vmem>>, vector<4x128xf32>
    tpu.vector_store %arg4[%c0_8, %c0_9], %14 {strides = array<i32>} : memref<4x128xf32, #tpu.memory_space<vmem>>, vector<4x128xf32>,
    return
  }
  func.func @transform_0(%arg0: i32) -> (i32, i32) {
    %c0_i32 = arith.constant 0 : i32
    %c0_i32_0 = arith.constant 0 : i32
    return %arg0, %c0_i32 : i32, i32
  }
  func.func @transform_1(%arg0: i32) -> (i32, i32) {
    %c0_i32 = arith.constant 0 : i32
    %c0_i32_0 = arith.constant 0 : i32
    %c0_i32_1 = arith.constant 0 : i32
    return %c0_i32, %c0_i32_0 : i32, i32
  }
  func.func @transform_2(%arg0: i32) -> (i32, i32) {
    %c0_i32 = arith.constant 0 : i32
    %c0_i32_0 = arith.constant 0 : i32
    %c0_i32_1 = arith.constant 0 : i32
    return %c0_i32, %c0_i32_0 : i32, i32
  }
  func.func @transform_3(%arg0: i32) -> (i32, i32) {
    %c0_i32 = arith.constant 0 : i32
    %c0_i32_0 = arith.constant 0 : i32
    return %arg0, %c0_i32 : i32, i32
  }
}

</mosaic_0001>

<llo_original>
// kernel: _sinusoidal_impl.1
$region0: #{_sinusoidal_impl.1}
  #allocation0 [shape = 'u32[]', space=smem, size = 0x4, offset = 0x4, fixed_abs, tag = 'smem constant byte address 0x4 - core index']
  #allocation1 [shape = 'u32[144,128]{1,0:T(1,128)}', space=vmem, size = 0x12000, scoped, tag = 'internal scratch']
  %s0 = inlined_call_operand.vmem [shape: f32[4,2], index: 0, kind: input, shape index: {}]
  %s1 = inlined_call_operand.vmem [shape: f32[2,128], index: 1, kind: input, shape index: {}]
  %s2 = inlined_call_operand.vmem [shape: f32[1,128], index: 2, kind: input, shape index: {}]
  %s3 = inlined_call_operand.vmem [shape: f32[4,128], index: 3, kind: output, shape index: {}]
  %s4 = sld [smem:[#allocation0]]
  $region22: #{_sinusoidal_impl.1} parent=0
    _
  %s6 = ssub.s32 1, %s4
  %s7 = scalar_select 0, %s6, %s4
  // Predicated region
  $region2: #{_sinusoidal_impl.1} parent=0 // pred_check
    _
  $region3: #{_sinusoidal_impl.1} parent=0 // pred_check_branch
    %9 = sbr.rel (0) target = $region5
  $region4: #{_sinusoidal_impl.1} parent=0 // pred_region
    _
  $region5: #{_sinusoidal_impl.1} parent=0 // pred_fallthru
    _
  // Predicated region
  $region6: #{_sinusoidal_impl.1} parent=0 // pred_check
    _
  $region7: #{_sinusoidal_impl.1} parent=0 // pred_check_branch
    %11 = sbr.rel (0) target = $region9
  $region8: #{_sinusoidal_impl.1} parent=0 // pred_region
    _
  $region9: #{_sinusoidal_impl.1} parent=0 // pred_fallthru
    _
  // Predicated region
  $region10: #{_sinusoidal_impl.1} parent=0 // pred_check
    _
  $region11: #{_sinusoidal_impl.1} parent=0 // pred_check_branch
    %13 = sbr.rel (0) target = $region13
  $region12: #{_sinusoidal_impl.1} parent=0 // pred_region
    _
  $region13: #{_sinusoidal_impl.1} parent=0 // pred_fallthru
    _
  %v14 = vld [vmem:[%s2] sm:$0x1]
  %v15 = vld [vmem:[%s0] sm:$0xf]
  %v16 = vld [vmem:[%s1] sm:$0x1]
  %18 = vset.pattern.permute.xlu0 0
  %19 = vperm.xlu0 %18, %v15
  %v20 = vpop.permute.xlu0 %19
  %v22 = vlaneseq
  %v23 = vshrl.u32 %v22, 7
  %v24 = vsub.s32 0, %v23
  %v25 = vrot.slane %v16, %v24
  %v26 = vmul.f32 %v20, %v25
  %v28 = vlaneseq
  %v29 = vshrl.u32 %v28, 7
  %v30 = vsub.s32 0, %v29
  %v31 = vrot.slane %v14, %v30
  %v33 = vadd.f32 %v31, %v26
  %v34 = vld [vmem:[%s1 + $0x1] sm:$0x1]
  %35 = vset.pattern.permute.xlu0 1
  %36 = vperm.xlu0 %35, %v15
  %v37 = vpop.permute.xlu0 %36
  %v39 = vlaneseq
  %v40 = vshrl.u32 %v39, 7
  %v41 = vsub.s32 0, %v40
  %v42 = vrot.slane %v34, %v41
  %v43 = vmul.f32 %v37, %v42
  %v44 = vadd.f32 %v33, %v43
  %v45 = vand.u32 2147483647, %v44
  %vm46 = vcmp.le.f32.partialorder %v45, 0.7853982
  %vm47 = vcmp.lt.s32.totalorder %v44, 0
  %v48 = vand.u32 %v44, 2139095040
  %v49 = vshrl.u32 %v48, 23
  %v50 = vsub.s32 %v49, 127
  %v51 = vand.u32 2147483647, %v44
  %v52 = vand.u32 %v51, 8388607
  %v53 = vor.u32 %v52, 8388608
  %v54 = vsub.s32 0, %v53
  %v55 = vadd.s32 %v50, 1
  %vm56 = vcmp.gt.s32.totalorder %v55, 0
  %v57 = vsel %vm56, %v55, 0
  %v58 = vshrl.u32 %v57, 5
  %v59 = vand.u32 %v57, 31
  %v60 = vsub.s32 32, %v59
  %v61 = vshrl.u32 683565275, %v60
  %v62 = vshll.u32 683565275, %v59
  %v63 = vshrl.u32 2475754826, %v60
  %v64 = vor.u32 %v62, %v63
  %v65 = vshll.u32 2475754826, %v59
  %v66 = vshrl.u32 2131351028, %v60
  %v67 = vor.u32 %v65, %v66
  %v68 = vshll.u32 2131351028, %v59
  %v69 = vshrl.u32 2102212464, %v60
  %v70 = vor.u32 %v68, %v69
  %v71 = vshll.u32 2102212464, %v59
  %v72 = vshrl.u32 920167782, %v60
  %v73 = vor.u32 %v71, %v72
  %v74 = vshll.u32 920167782, %v59
  %v75 = vshrl.u32 1326507024, %v60
  %v76 = vor.u32 %v74, %v75
  %vm77 = vcmp.lt.s32.totalorder %v58, 1
  %vm78 = vcmp.lt.s32.totalorder %v58, 2
  %vm79 = vcmp.lt.s32.totalorder %v58, 3
  %vm80 = vcmp.lt.s32.totalorder %v58, 4
  %v81 = vsel %vm77, %v61, %v64
  %v82 = vsel %vm80, %v70, 2102212464
  %v83 = vsel %vm79, %v67, %v82
  %v84 = vsel %vm78, %v81, %v83
  %v85 = vsel %vm77, %v64, %v67
  %v86 = vsel %vm80, %v73, 920167782
  %v87 = vsel %vm79, %v70, %v86
  %v88 = vsel %vm78, %v85, %v87
  %v89 = vsel %vm77, %v67, %v70
  %v90 = vsel %vm80, %v76, 1326507024
  %v91 = vsel %vm79, %v73, %v90
  %v92 = vsel %vm78, %v89, %v91
  %v93 = vshll.u32 %v53, 8
  %v94 = vmul.u32.u64.compose %v93, %v92
  %v95 = vextract.low.u32 %v94
  %v96 = vextract.high.u32 %v94
  %v97 = vmul.u32.u64.compose %v93, %v88
  %v98 = vextract.low.u32 %v97
  %v99 = vextract.high.u32 %v97
  %v100 = vmul.u32 %v93, %v84
  %v101 = vadd.s32 %v96, %v98
  %vm102 = vc.u32 %v96, %v98
  %v103 = vadd.s32 %v99, 1
  %v104 = vsel %vm102, %v103, %v99
  %v105 = vadd.s32 %v100, %v104
  %v106 = vadd.s32 %v105, 536870912
  %v107 = vshrl.u32 %v106, 30
  %v108 = vshll.u32 %v107, 30
  %v109 = vsub.s32 %v105, %v108
  %vm110 = vcmp.lt.s32.totalorder %v109, 0
  %v111 = vsub.s32 0, %v109
  %v112 = vsel %vm110, %v111, %v109
  %v113 = vclz %v112
  %v114 = vsub.s32 %v113, 2
  %vm115 = vcmp.gt.s32.totalorder 0, %v114
  %v116 = vsel %vm115, 0, %v114
  %v117 = vsub.s32 32, %v116
  %v118 = vshll.u32 %v109, %v116
  %v119 = vshrl.u32 %v101, %v117
  %v120 = vor.u32 %v118, %v119
  %v121 = vsub.s32 4294967266, %v116
  %v122 = vadd.s32 %v121, 127
  %v123 = vshll.u32 %v122, 23
  %v124 = vor.u32 4788187, %v123
  %v125 = vand.u32 2147483647, %v124
  %v127 = vcvt.s32.f32 %v120
  %v128 = vmul.f32 %v127, %v125
  %v129 = vxor.u32 %v128, 2147483648
  %v130 = vsel %vm47, %v129, %v128
  %v131 = vsub.s32 4, %v107
  %v132 = vsel %vm47, %v131, %v107
  %v133 = vsel %vm46, %v44, %v130
  %v134 = vsel %vm46, 0, %v132
  %v135 = vcosq.f32.pop %v133
  %v136 = vsinq.f32.pop %v133
  %vm137 = vweird.f32 %v44
  %v138 = vadd.s32 %v134, 3
  %v139 = vand.u32 %v138, 3
  %vm140 = vcmp.lt.s32.totalorder %v139, 2
  %vm141 = vcmp.eq.s32.totalorder %v139, 0
  %v142 = vxor.u32 %v136, 2147483648
  %v143 = vsel %vm141, %v135, %v142
  %vm144 = vcmp.eq.s32.totalorder %v139, 2
  %v145 = vxor.u32 %v135, 2147483648
  %v146 = vsel %vm144, %v145, %v136
  %v147 = vsel %vm140, %v143, %v146
  %v148 = vsel %vm137, nan, %v147
  %149 = vst [vmem:[%s3] sm:$0xf] %v148
  // Predicated region
  $region14: #{_sinusoidal_impl.1} parent=0 // pred_check
    _
  $region15: #{_sinusoidal_impl.1} parent=0 // pred_check_branch
    %151 = sbr.rel (0) target = $region17
  $region16: #{_sinusoidal_impl.1} parent=0 // pred_region
    _
  $region17: #{_sinusoidal_impl.1} parent=0 // pred_fallthru
    _
  // Predicated region
  $region18: #{_sinusoidal_impl.1} parent=0 // pred_check
    _
  $region19: #{_sinusoidal_impl.1} parent=0 // pred_check_branch
    %153 = sbr.rel (0) target = $region21
  $region20: #{_sinusoidal_impl.1} parent=0 // pred_region
    _
  $region21: #{_sinusoidal_impl.1} parent=0 // pred_fallthru
    _

</llo_original>
